<compile_context>
chip_gen: v7x
topology: tpu7x:2x2x1
jax: 0.10.0
libtpu: 0.0.40
codegen_flags: <defaults>
</compile_context>

<pallas_src>
import jax
import jax.numpy as jnp
from jax import lax
from jax.experimental import pallas as pl
from jax.experimental.pallas import tpu as pltpu


def mlp_kernel(x_ref, w1_ref, b1_ref, w2_ref, b2_ref, o_ref):
    x = x_ref[...]                                  # (tile, F) batch-major
    # h = x @ W1^T : contract x's feature dim with W1's "in" dim (PyTorch
    # Linear weight layout is (out, in)).  Result stays batch-major (tile, F).
    h = lax.dot_general(
        x, w1_ref[...],
        dimension_numbers=(((1,), (1,)), ((), ())),
        preferred_element_type=jnp.float32,
    )
    h = jnp.maximum(h + b1_ref[...], 0.0)           # bias (1, F) broadcasts over rows
    # y = h @ W2^T : same contraction, directly yields (tile, F) on the MXU —
    # no transpose anywhere, kernel output is already batch-major.
    y = lax.dot_general(
        h, w2_ref[...],
        dimension_numbers=(((1,), (1,)), ((), ())),
        preferred_element_type=jnp.float32,
    )
    y = y + b2_ref[...]
    # sigmoid(z) = 1 / (1 + exp(-z)); exp + approx reciprocal both run on the EUP.
    o_ref[...] = pl.reciprocal(1.0 + jnp.exp(-y), approx=True)


def seq_forward(x, w1, b1, w2, b2, *, tile_b=8192):
    """Forward of Seq.  x: (B, 10); w1, w2: (out, in) = (10, 10); b1, b2: (10,)."""
    B, F = x.shape
    b1_row = b1.reshape(1, F).astype(jnp.float32)
    b2_row = b2.reshape(1, F).astype(jnp.float32)

    # Single full-extent block for small B (always legal); otherwise 8-aligned
    # batch tiles with a ragged, clipped last block (no jnp.pad, no output slice).
    tile = B if B <= tile_b else tile_b
    grid = (pl.cdiv(B, tile),)

    return pl.pallas_call(
        mlp_kernel,
        out_shape=jax.ShapeDtypeStruct((B, F), jnp.float32),
        grid=grid,
        in_specs=[
            pl.BlockSpec((tile, F), lambda i: (i, 0)),   # x: tiled over batch
            pl.BlockSpec((F, F), lambda i: (0, 0)),      # w1: resident across steps
            pl.BlockSpec((1, F), lambda i: (0, 0)),      # b1: resident
            pl.BlockSpec((F, F), lambda i: (0, 0)),      # w2: resident
            pl.BlockSpec((1, F), lambda i: (0, 0)),      # b2: resident
        ],
        out_specs=pl.BlockSpec((tile, F), lambda i: (i, 0)),   # batch-major output
        compiler_params=pltpu.CompilerParams(
            dimension_semantics=("parallel",),     # batch tiles are independent
            vmem_limit_bytes=40 << 20,             # lane-padded tiles need ~24 MiB
        ),
    )(x, w1, b1_row, w2, b2_row)


def reference_forward(x, w1, b1, w2, b2):
    h = jnp.maximum(x @ w1.T + b1, 0.0)
    return jax.nn.sigmoid(h @ w2.T + b2)


if __name__ == "__main__":
    key = jax.random.PRNGKey(0)
    k_x, k_w1, k_b1, k_w2, k_b2 = jax.random.split(key, 5)

    B, F = 8, 10    # feature dim fixed by the module (Linear(10, 10))
    x = jax.random.normal(k_x, (B, F), dtype=jnp.float32)

    # Deterministic params, PyTorch Linear layout (out_features, in_features).
    bound = 1.0 / (F ** 0.5)
    w1 = jax.random.uniform(k_w1, (F, F), jnp.float32, -bound, bound)
    b1 = jax.random.uniform(k_b1, (F,), jnp.float32, -bound, bound)
    w2 = jax.random.uniform(k_w2, (F, F), jnp.float32, -bound, bound)
    b2 = jax.random.uniform(k_b2, (F,), jnp.float32, -bound, bound)

    # Small-shape run (single full block).
    y = seq_forward(x, w1, b1, w2, b2)
    jax.block_until_ready(y)
    y_ref = reference_forward(x, w1, b1, w2, b2)
    assert y.shape == (B, F)
    # approx reciprocal (EUP) has ~2^-12 relative error; sigmoid outputs lie in (0, 1).
    assert jnp.allclose(y, y_ref, atol=2e-3, rtol=2e-3), "mismatch vs reference (small B)"

    # Multi-tile + ragged-last-block path (no pad, clipped writes).
    B2 = 300
    x2 = jax.random.normal(jax.random.PRNGKey(1), (B2, F), dtype=jnp.float32)
    y2 = seq_forward(x2, w1, b1, w2, b2, tile_b=128)
    jax.block_until_ready(y2)
    y2_ref = reference_forward(x2, w1, b1, w2, b2)
    assert y2.shape == (B2, F)
    assert jnp.allclose(y2, y2_ref, atol=2e-3, rtol=2e-3), "mismatch vs reference (ragged B)"

    print("KERNEL_OK")
</pallas_src>

<mosaic_0001>
module attributes {stable_mosaic.version = 11 : i64} {
  func.func @mlp_kernel(%arg0: i32, %arg1: memref<8x10xf32, #tpu.memory_space<vmem>>, %arg2: memref<10x10xf32, #tpu.memory_space<vmem>>, %arg3: memref<1x10xf32, #tpu.memory_space<vmem>>, %arg4: memref<10x10xf32, #tpu.memory_space<vmem>>, %arg5: memref<1x10xf32, #tpu.memory_space<vmem>>, %arg6: memref<8x10xf32, #tpu.memory_space<vmem>>) attributes {dimension_semantics = [#tpu.dimension_semantics<parallel>], iteration_bounds = array<i64: 1>, scalar_prefetch = 0 : i64, scratch_operands = 0 : i64, tpu.core_type = #tpu.core_type<tc>, window_params = [{transform_indices = @transform_0, window_bounds = array<i64: 8, 10>}, {pipeline_mode = #tpu.pipeline_mode<synchronous>, transform_indices = @transform_1, window_bounds = array<i64: 10, 10>}, {pipeline_mode = #tpu.pipeline_mode<synchronous>, transform_indices = @transform_2, window_bounds = array<i64: 1, 10>}, {pipeline_mode = #tpu.pipeline_mode<synchronous>, transform_indices = @transform_3, window_bounds = array<i64: 10, 10>}, {pipeline_mode = #tpu.pipeline_mode<synchronous>, transform_indices = @transform_4, window_bounds = array<i64: 1, 10>}, {transform_indices = @transform_5, window_bounds = array<i64: 8, 10>}]} {
    %c0 = arith.constant 0 : index
    %c0_0 = arith.constant 0 : index
    %0 = vector.load %arg1[%c0, %c0_0] : memref<8x10xf32, #tpu.memory_space<vmem>>, vector<8x10xf32>
    %c0_1 = arith.constant 0 : index
    %c0_2 = arith.constant 0 : index
    %1 = vector.load %arg2[%c0_1, %c0_2] : memref<10x10xf32, #tpu.memory_space<vmem>>, vector<10x10xf32>
    %cst = arith.constant dense<0.000000e+00> : vector<8x10xf32>
    %2 = tpu.matmul %0, %1, %cst {dimension_numbers = #tpu.dot_dimension_numbers<[1], [1], [0], [0], [0, 0, 1, 0], [], []>} : vector<8x10xf32>, vector<10x10xf32>, vector<8x10xf32> -> vector<8x10xf32>
    %c0_3 = arith.constant 0 : index
    %c0_4 = arith.constant 0 : index
    %3 = vector.load %arg3[%c0_3, %c0_4] : memref<1x10xf32, #tpu.memory_space<vmem>>, vector<1x10xf32>
    %4 = vector.broadcast %3 : vector<1x10xf32> to vector<8x10xf32>
    %5 = arith.addf %2, %4 : vector<8x10xf32>
    %cst_5 = arith.constant 0.000000e+00 : f32
    %6 = vector.broadcast %cst_5 : f32 to vector<8x10xf32>
    %7 = arith.maximumf %5, %6 : vector<8x10xf32>
    %c0_6 = arith.constant 0 : index
    %c0_7 = arith.constant 0 : index
    %8 = vector.load %arg4[%c0_6, %c0_7] : memref<10x10xf32, #tpu.memory_space<vmem>>, vector<10x10xf32>
    %cst_8 = arith.constant dense<0.000000e+00> : vector<8x10xf32>
    %9 = tpu.matmul %7, %8, %cst_8 {dimension_numbers = #tpu.dot_dimension_numbers<[1], [1], [0], [0], [0, 0, 1, 0], [], []>} : vector<8x10xf32>, vector<10x10xf32>, vector<8x10xf32> -> vector<8x10xf32>
    %c0_9 = arith.constant 0 : index
    %c0_10 = arith.constant 0 : index
    %10 = vector.load %arg5[%c0_9, %c0_10] : memref<1x10xf32, #tpu.memory_space<vmem>>, vector<1x10xf32>
    %11 = vector.broadcast %10 : vector<1x10xf32> to vector<8x10xf32>
    %12 = arith.addf %9, %11 : vector<8x10xf32>
    %cst_11 = arith.constant 0.000000e+00 : f32
    %13 = vector.broadcast %cst_11 : f32 to vector<8x10xf32>
    %14 = arith.subf %13, %12 : vector<8x10xf32>
    %15 = math.exp %14 : vector<8x10xf32>
    %cst_12 = arith.constant 1.000000e+00 : f32
    %16 = vector.broadcast %cst_12 : f32 to vector<8x10xf32>
    %17 = arith.addf %16, %15 : vector<8x10xf32>
    %18 = tpu.reciprocal %17 {approx = true} : vector<8x10xf32> -> vector<8x10xf32>
    %c0_13 = arith.constant 0 : index
    %c0_14 = arith.constant 0 : index
    %19 = vector.load %arg6[%c0_13, %c0_14] : memref<8x10xf32, #tpu.memory_space<vmem>>, vector<8x10xf32>
    tpu.vector_store %arg6[%c0_13, %c0_14], %18 {strides = array<i32>} : memref<8x10xf32, #tpu.memory_space<vmem>>, vector<8x10xf32>,
    return
  }
  func.func @transform_0(%arg0: i32) -> (i32, i32) {
    %c0_i32 = arith.constant 0 : i32
    %c0_i32_0 = arith.constant 0 : i32
    return %arg0, %c0_i32 : i32, i32
  }
  func.func @transform_1(%arg0: i32) -> (i32, i32) {
    %c0_i32 = arith.constant 0 : i32
    %c0_i32_0 = arith.constant 0 : i32
    %c0_i32_1 = arith.constant 0 : i32
    return %c0_i32, %c0_i32_0 : i32, i32
  }
  func.func @transform_2(%arg0: i32) -> (i32, i32) {
    %c0_i32 = arith.constant 0 : i32
    %c0_i32_0 = arith.constant 0 : i32
    %c0_i32_1 = arith.constant 0 : i32
    return %c0_i32, %c0_i32_0 : i32, i32
  }
  func.func @transform_3(%arg0: i32) -> (i32, i32) {
    %c0_i32 = arith.constant 0 : i32
    %c0_i32_0 = arith.constant 0 : i32
    %c0_i32_1 = arith.constant 0 : i32
    return %c0_i32, %c0_i32_0 : i32, i32
  }
  func.func @transform_4(%arg0: i32) -> (i32, i32) {
    %c0_i32 = arith.constant 0 : i32
    %c0_i32_0 = arith.constant 0 : i32
    %c0_i32_1 = arith.constant 0 : i32
    return %c0_i32, %c0_i32_0 : i32, i32
  }
  func.func @transform_5(%arg0: i32) -> (i32, i32) {
    %c0_i32 = arith.constant 0 : i32
    %c0_i32_0 = arith.constant 0 : i32
    return %arg0, %c0_i32 : i32, i32
  }
}

</mosaic_0001>

<llo_original>
// kernel: tpu_custom_call.1
$region0: #{tpu_custom_call.1}
  #allocation0 [shape = 'u32[]', space=smem, size = 0x4, offset = 0x4, fixed_abs, tag = 'smem constant byte address 0x4 - core index']
  #allocation1 [shape = 'u32[144,128]{1,0:T(1,128)}', space=vmem, size = 0x12000, scoped, tag = 'internal scratch']
  %s0 = inlined_call_operand.hbm [shape: f32[8,10], index: 0, kind: input, shape index: {}]
  %s1 = inlined_call_operand.hbm [shape: f32[10,10], index: 1, kind: input, shape index: {}]
  %s2 = inlined_call_operand.vmem [shape: f32[1,10], index: 2, kind: input, shape index: {}]
  %s3 = inlined_call_operand.hbm [shape: f32[10,10], index: 3, kind: input, shape index: {}]
  %s4 = inlined_call_operand.vmem [shape: f32[1,10], index: 4, kind: input, shape index: {}]
  %s5 = inlined_call_operand.hbm [shape: f32[8,10], index: 5, kind: output, shape index: {}]
  %s6 = sld [smem:[#allocation0]]
  $region42: #{tpu_custom_call.1} parent=0
    _
  %s8 = ssub.s32 1, %s6
  %s9 = scalar_select 0, %s8, %s6
  $region1: #{tpu_custom_call.1} parent=0
    #allocation2 [shape = 'u8[4096]{0}', space=vmem, size = 0x1000, scoped, tag = 'input window, operand 0, single buffered']
    #allocation3 [shape = 's32[1]{0}', space=sflag, size = 0x4, scoped, tag = 'scoped memory for tpu_custom_call.1']
    #allocation4 [shape = 's32[1]{0}', space=sflag, size = 0x4, scoped, tag = 'scoped memory for tpu_custom_call.1']
    #allocation5 [shape = 'u8[8192]{0}', space=vmem, size = 0x2000, scoped, tag = 'input window, operand 1, single buffered']
    #allocation6 [shape = 's32[1]{0}', space=sflag, size = 0x4, scoped, tag = 'scoped memory for tpu_custom_call.1']
    #allocation7 [shape = 'u8[8192]{0}', space=vmem, size = 0x2000, scoped, tag = 'input window, operand 3, single buffered']
    #allocation8 [shape = 'u8[4096]{0}', space=vmem, size = 0x1000, scoped, tag = 'output window, operand 0, single buffered']
    %10 = vsyncpa [#allocation3], 0
    %11 = vsyncpa [#allocation6], 0
    %12 = vsyncpa [#allocation4], 0
    // Predicated region
    $region2: #{tpu_custom_call.1} parent=1 // pred_check
      _
    $region3: #{tpu_custom_call.1} parent=1 // pred_check_branch
      %14 = sbr.rel (0) target = $region5
    $region4: #{tpu_custom_call.1} parent=1 // pred_region
      %s16 = ssub.s32 128, 128
      %17 = vsyncadd [#allocation3], %s16
      %s19 = sshll.u32 [#allocation2], 4
      %s20 = int_to_ptr.vmem [resolvable:$true] %s19
      %22 = dma.hbm_to_vmem [thread:$0]  %s0, 128, %s20, [#allocation3]
    $region5: #{tpu_custom_call.1} parent=1 // pred_fallthru
      _
    // Predicated region
    $region6: #{tpu_custom_call.1} parent=1 // pred_check
      _
    $region7: #{tpu_custom_call.1} parent=1 // pred_check_branch
      %24 = sbr.rel (0) target = $region9
    $region8: #{tpu_custom_call.1} parent=1 // pred_region
      %s26 = ssub.s32 256, 256
      %27 = vsyncadd [#allocation6], %s26
      %s28 = sshll.u32 [#allocation5], 4
      %s29 = int_to_ptr.vmem [resolvable:$true] %s28
      %34 = dma.hbm_to_vmem [thread:$0]  %s1, 256, %s29, [#allocation6], 128, 128, 8
    $region9: #{tpu_custom_call.1} parent=1 // pred_fallthru
      _
    // Predicated region
    $region10: #{tpu_custom_call.1} parent=1 // pred_check
      _
    $region11: #{tpu_custom_call.1} parent=1 // pred_check_branch
      %36 = sbr.rel (0) target = $region13
    $region12: #{tpu_custom_call.1} parent=1 // pred_region
      _
    $region13: #{tpu_custom_call.1} parent=1 // pred_fallthru
      _
    // Predicated region
    $region14: #{tpu_custom_call.1} parent=1 // pred_check
      _
    $region15: #{tpu_custom_call.1} parent=1 // pred_check_branch
      %38 = sbr.rel (0) target = $region17
    $region16: #{tpu_custom_call.1} parent=1 // pred_region
      %s40 = ssub.s32 256, 256
      %41 = vsyncadd [#allocation6], %s40
      %s42 = sshll.u32 [#allocation7], 4
      %s43 = int_to_ptr.vmem [resolvable:$true] %s42
      %48 = dma.hbm_to_vmem [thread:$0]  %s3, 256, %s43, [#allocation6], 128, 128, 8
    $region17: #{tpu_custom_call.1} parent=1 // pred_fallthru
      _
    // Predicated region
    $region18: #{tpu_custom_call.1} parent=1 // pred_check
      _
    $region19: #{tpu_custom_call.1} parent=1 // pred_check_branch
      %50 = sbr.rel (0) target = $region21
    $region20: #{tpu_custom_call.1} parent=1 // pred_region
      _
    $region21: #{tpu_custom_call.1} parent=1 // pred_fallthru
      _
    // Predicated region
    $region22: #{tpu_custom_call.1} parent=1 // pred_check
      _
    $region23: #{tpu_custom_call.1} parent=1 // pred_check_branch
      %52 = sbr.rel (0) target = $region25
    $region24: #{tpu_custom_call.1} parent=1 // pred_region
      %53 = dma.done [#allocation3], 128
    $region25: #{tpu_custom_call.1} parent=1 // pred_fallthru
      _
    // Predicated region
    $region26: #{tpu_custom_call.1} parent=1 // pred_check
      _
    $region27: #{tpu_custom_call.1} parent=1 // pred_check_branch
      %55 = sbr.rel (0) target = $region29
    $region28: #{tpu_custom_call.1} parent=1 // pred_region
      %56 = dma.done [#allocation6], 256
    $region29: #{tpu_custom_call.1} parent=1 // pred_fallthru
      _
    // Predicated region
    $region30: #{tpu_custom_call.1} parent=1 // pred_check
      _
    $region31: #{tpu_custom_call.1} parent=1 // pred_check_branch
      %58 = sbr.rel (0) target = $region33
    $region32: #{tpu_custom_call.1} parent=1 // pred_region
      %59 = dma.done [#allocation6], 256
    $region33: #{tpu_custom_call.1} parent=1 // pred_fallthru
      _
    %v60 = vld [vmem:[#allocation2] sm:$0xff]
    %v61 = vld [vmem:[#allocation5] sm:$0xff]
    %v62 = vld [vmem:[#allocation5 + $0x8] sm:$0x3]
    %v63 = vld [vmem:[%s2] sm:$0x1]
    %v65 = vlaneseq
    %v66 = vshrl.u32 %v65, 7
    %v67 = vsub.s32 0, %v66
    %v68 = vrot.slane %v63, %v67
    %vm70 = vcmask 80896
    %v72 = vsel %vm70, %v60, 0
    %v75 = vsel %vm70, %v61, 0
    %v78 = vsel %vm70, %v62, 0
    %80 = vmatprep.subr.mxu0 0.0
    %81 = vmatpush1.xpose.msra.mxu0 %v75
    %82 = vmatprep.subr.mxu0 0.0
    %83 = vmatpush1.xpose.msra.mxu0 %v78
    %84 = vmatprep.subr.mxu0 0.0
    %85 = vmatpush1.xpose.msra.mxu0 0.0
    %86 = vmatprep.subr.mxu0 0.0
    %87 = vmatpush1.xpose.msra.mxu0 0.0
    %88 = vmatprep.subr.mxu0 0.0
    %89 = vmatpush1.xpose.msra.mxu0 0.0
    %90 = vmatprep.subr.mxu0 0.0
    %91 = vmatpush1.xpose.msra.mxu0 0.0
    %92 = vmatprep.subr.mxu0 0.0
    %93 = vmatpush1.xpose.msra.mxu0 0.0
    %94 = vmatprep.subr.mxu0 0.0
    %95 = vmatpush1.xpose.msra.mxu0 0.0
    %96 = vmatprep.subr.mxu0 0.0
    %97 = vmatpush1.xpose.msra.mxu0 0.0
    %98 = vmatprep.subr.mxu0 0.0
    %99 = vmatpush1.xpose.msra.mxu0 0.0
    %100 = vmatprep.subr.mxu0 0.0
    %101 = vmatpush1.xpose.msra.mxu0 0.0
    %102 = vmatprep.subr.mxu0 0.0
    %103 = vmatpush1.xpose.msra.mxu0 0.0
    %104 = vmatprep.subr.mxu0 0.0
    %105 = vmatpush1.xpose.msra.mxu0 0.0
    %106 = vmatprep.subr.mxu0 0.0
    %107 = vmatpush1.xpose.msra.mxu0 0.0
    %108 = vmatprep.subr.mxu0 0.0
    %109 = vmatpush1.xpose.msra.mxu0 0.0
    %110 = vmatprep.subr.mxu0 0.0
    %111 = vmatpush1.xpose.msra.mxu0 0.0
    %112 = vmatprep.subr.mxu0 0.0
    %113 = vmatpush1.xpose.msra.mxu0 0.0
    %114 = vmatprep.subr.mxu0 0.0
    %115 = vmatpush1.xpose.msra.mxu0 0.0
    %116 = vmatprep.subr.mxu0 0.0
    %117 = vmatpush1.xpose.msra.mxu0 0.0
    %118 = vmatprep.subr.mxu0 0.0
    %119 = vmatpush1.xpose.msra.mxu0 0.0
    %120 = vmatprep.subr.mxu0 0.0
    %121 = vmatpush1.xpose.msra.mxu0 0.0
    %122 = vmatprep.subr.mxu0 0.0
    %123 = vmatpush1.xpose.msra.mxu0 0.0
    %124 = vmatprep.subr.mxu0 0.0
    %125 = vmatpush1.xpose.msra.mxu0 0.0
    %126 = vmatprep.subr.mxu0 0.0
    %127 = vmatpush1.xpose.msra.mxu0 0.0
    %128 = vmatprep.subr.mxu0 0.0
    %129 = vmatpush1.xpose.msra.mxu0 0.0
    %130 = vmatprep.subr.mxu0 0.0
    %131 = vmatpush1.xpose.msra.mxu0 0.0
    %132 = vmatprep.subr.mxu0 0.0
    %133 = vmatpush1.xpose.msra.mxu0 0.0
    %134 = vmatprep.subr.mxu0 0.0
    %135 = vmatpush1.xpose.msra.mxu0 0.0
    %136 = vmatprep.subr.mxu0 0.0
    %137 = vmatpush1.xpose.msra.mxu0 0.0
    %138 = vmatprep.subr.mxu0 0.0
    %139 = vmatpush1.xpose.msra.mxu0 0.0
    %140 = vmatprep.subr.mxu0 0.0
    %141 = vmatpush1.xpose.msra.mxu0 0.0
    %142 = vmatprep.subr.mxu0 0.0
    %143 = vmatpush1.xpose.msra.mxu0 0.0
    %144 = vmatprep.mubr.f32.mxu0 0.0
    %145 = vmatmul.mubr.f32.gmra.mrb[0].mxu0 %v72
    %v146 = vpop.f32.mrb[0].mxu0
    %v147 = vadd.f32 %v68, %v146
    %v148 = vpop.f32.mrb[0].mxu0
    %149 = vdwg.mxu0
    %v150 = vmax.f32 %v147, 0.0
    %v151 = vld [vmem:[#allocation7] sm:$0xff]
    %v152 = vld [vmem:[#allocation7 + $0x8] sm:$0x3]
    %v153 = vld [vmem:[%s4] sm:$0x1]
    %v155 = vlaneseq
    %v156 = vshrl.u32 %v155, 7
    %v157 = vsub.s32 0, %v156
    %v158 = vrot.slane %v153, %v157
    %v161 = vsel %vm70, %v150, 0
    %v164 = vsel %vm70, %v151, 0
    %v167 = vsel %vm70, %v152, 0
    %169 = vmatprep.subr.mxu0 0.0
    %170 = vmatpush1.xpose.msra.mxu0 %v164
    %171 = vmatprep.subr.mxu0 0.0
    %172 = vmatpush1.xpose.msra.mxu0 %v167
    %173 = vmatprep.subr.mxu0 0.0
    %174 = vmatpush1.xpose.msra.mxu0 0.0
    %175 = vmatprep.subr.mxu0 0.0
    %176 = vmatpush1.xpose.msra.mxu0 0.0
    %177 = vmatprep.subr.mxu0 0.0
    %178 = vmatpush1.xpose.msra.mxu0 0.0
    %179 = vmatprep.subr.mxu0 0.0
    %180 = vmatpush1.xpose.msra.mxu0 0.0
    %181 = vmatprep.subr.mxu0 0.0
    %182 = vmatpush1.xpose.msra.mxu0 0.0
    %183 = vmatprep.subr.mxu0 0.0
    %184 = vmatpush1.xpose.msra.mxu0 0.0
    %185 = vmatprep.subr.mxu0 0.0
    %186 = vmatpush1.xpose.msra.mxu0 0.0
    %187 = vmatprep.subr.mxu0 0.0
    %188 = vmatpush1.xpose.msra.mxu0 0.0
    %189 = vmatprep.subr.mxu0 0.0
    %190 = vmatpush1.xpose.msra.mxu0 0.0
    %191 = vmatprep.subr.mxu0 0.0
    %192 = vmatpush1.xpose.msra.mxu0 0.0
    %193 = vmatprep.subr.mxu0 0.0
    %194 = vmatpush1.xpose.msra.mxu0 0.0
    %195 = vmatprep.subr.mxu0 0.0
    %196 = vmatpush1.xpose.msra.mxu0 0.0
    %197 = vmatprep.subr.mxu0 0.0
    %198 = vmatpush1.xpose.msra.mxu0 0.0
    %199 = vmatprep.subr.mxu0 0.0
    %200 = vmatpush1.xpose.msra.mxu0 0.0
    %201 = vmatprep.subr.mxu0 0.0
    %202 = vmatpush1.xpose.msra.mxu0 0.0
    %203 = vmatprep.subr.mxu0 0.0
    %204 = vmatpush1.xpose.msra.mxu0 0.0
    %205 = vmatprep.subr.mxu0 0.0
    %206 = vmatpush1.xpose.msra.mxu0 0.0
    %207 = vmatprep.subr.mxu0 0.0
    %208 = vmatpush1.xpose.msra.mxu0 0.0
    %209 = vmatprep.subr.mxu0 0.0
    %210 = vmatpush1.xpose.msra.mxu0 0.0
    %211 = vmatprep.subr.mxu0 0.0
    %212 = vmatpush1.xpose.msra.mxu0 0.0
    %213 = vmatprep.subr.mxu0 0.0
    %214 = vmatpush1.xpose.msra.mxu0 0.0
    %215 = vmatprep.subr.mxu0 0.0
    %216 = vmatpush1.xpose.msra.mxu0 0.0
    %217 = vmatprep.subr.mxu0 0.0
    %218 = vmatpush1.xpose.msra.mxu0 0.0
    %219 = vmatprep.subr.mxu0 0.0
    %220 = vmatpush1.xpose.msra.mxu0 0.0
    %221 = vmatprep.subr.mxu0 0.0
    %222 = vmatpush1.xpose.msra.mxu0 0.0
    %223 = vmatprep.subr.mxu0 0.0
    %224 = vmatpush1.xpose.msra.mxu0 0.0
    %225 = vmatprep.subr.mxu0 0.0
    %226 = vmatpush1.xpose.msra.mxu0 0.0
    %227 = vmatprep.subr.mxu0 0.0
    %228 = vmatpush1.xpose.msra.mxu0 0.0
    %229 = vmatprep.subr.mxu0 0.0
    %230 = vmatpush1.xpose.msra.mxu0 0.0
    %231 = vmatprep.subr.mxu0 0.0
    %232 = vmatpush1.xpose.msra.mxu0 0.0
    %233 = vmatprep.mubr.f32.mxu0 0.0
    %234 = vmatmul.mubr.f32.gmra.mrb[0].mxu0 %v161
    %v235 = vpop.f32.mrb[0].mxu0
    %v236 = vadd.f32 %v158, %v235
    %v237 = vpop.f32.mrb[0].mxu0
    %238 = vdwg.mxu0
    %v239 = vsub.f32 0.0, %v236
    %v240 = vmul.f32 %v239, 1.442695
    %v241 = vpow.pop %v240
    %v242 = vadd.f32 %v241, 1.0
    %v243 = vrcp.pop %v242
    %244 = vst.msk [vmem:[#allocation8] sm:$0xff] %vm70, %v243
    // Predicated region
    $region34: #{tpu_custom_call.1} parent=1 // pred_check
      _
    $region35: #{tpu_custom_call.1} parent=1 // pred_check_branch
      %246 = sbr.rel (0) target = $region37
    $region36: #{tpu_custom_call.1} parent=1 // pred_region
      %s248 = ssub.s32 128, 128
      %249 = vsyncadd [#allocation4], %s248
      %s251 = sshll.u32 [#allocation8], 4
      %s252 = int_to_ptr.vmem [resolvable:$true] %s251
      %254 = dma.vmem_to_hbm [thread:$0]  %s252, 128, %s5, [#allocation4]
    $region37: #{tpu_custom_call.1} parent=1 // pred_fallthru
      _
    // Predicated region
    $region38: #{tpu_custom_call.1} parent=1 // pred_check
      _
    $region39: #{tpu_custom_call.1} parent=1 // pred_check_branch
      %256 = sbr.rel (0) target = $region41
    $region40: #{tpu_custom_call.1} parent=1 // pred_region
      %257 = dma.done [#allocation4], 128
    $region41: #{tpu_custom_call.1} parent=1 // pred_fallthru
      _
    %258 = vsyncpa [#allocation3], 1
    %259 = vsyncpa [#allocation6], 1
    %260 = vsyncpa [#allocation4], 1

</llo_original>
